<compile_context>
chip_gen: v5e
topology: v5e:2x2
jax: 0.10.0
libtpu: 0.0.40
codegen_flags: <defaults>
</compile_context>

<pallas_src>
import functools

import jax
import jax.numpy as jnp
from jax.experimental import pallas as pl
from jax.experimental.pallas import tpu as pltpu

_PACK = 8  # batch rows packed side-by-side along lanes


def decoder_kernel(x_ref, w1_ref, b1_ref, w2_ref, b2_ref, w3_ref, b3_ref, o_ref):
    """tanh(tanh(tanh(x W1 + b1) W2 + b2) W3 + b3) for one packed batch tile."""
    x = x_ref[...].astype(jnp.float32)
    h1 = jnp.tanh(
        jnp.dot(x, w1_ref[...], preferred_element_type=jnp.float32) + b1_ref[...]
    )
    h2 = jnp.tanh(
        jnp.dot(h1, w2_ref[...], preferred_element_type=jnp.float32) + b2_ref[...]
    )
    y = jnp.tanh(
        jnp.dot(h2, w3_ref[...], preferred_element_type=jnp.float32) + b3_ref[...]
    )
    o_ref[...] = y.astype(o_ref.dtype)


def _ceil_to(v, mult):
    return ((v + mult - 1) // mult) * mult


def _block_diag(w, p):
    """(K, N) -> (p*K, p*N) block-diagonal with p copies of w on the diagonal."""
    eye = jnp.eye(p, dtype=w.dtype)
    k, n = w.shape
    return jnp.einsum("pq,kn->pkqn", eye, w).reshape(p * k, p * n)


@functools.partial(jax.jit, static_argnames=("m", "n", "b", "tm"))
def decoder_forward(x, params, *, m, n, b, tm=512):
    """Pallas implementation of decoderNet.forward.

    x: any shape whose elements reshape to (-1, b) (PyTorch view(-1, 1, b)).
       I/O dtype follows x (bf16 recommended); compute is f32 in-kernel.
    tm: batch tile in *packed* rows (multiple of 8); each packed row holds
        _PACK original batch rows.
    Returns array of shape (-1, 1, m, n) in x's dtype.
    """
    w1, b1, w2, b2, w3, b3 = params
    P = _PACK
    hid = w1.shape[1]
    out_dim = w3.shape[1]

    x2d = x.reshape(-1, b)  # no dtype cast: carry caller's dtype end-to-end
    batch = x2d.shape[0]

    # --- pack P batch rows per lane-row (lane-dense input) ---
    pad_rows = (-batch) % P
    if pad_rows:
        x2d = jnp.pad(x2d, ((0, pad_rows), (0, 0)))
    bp = x2d.shape[0] // P
    xp = x2d.reshape(bp, P * b)

    # --- block-diagonal weights / tiled biases (tiny, VMEM resident) ---
    w1p = _block_diag(w1, P)              # (P*b,   P*hid)
    w2p = _block_diag(w2, P)              # (P*hid, P*hid)
    w3p = _block_diag(w3, P)              # (P*hid, P*out)
    b1p = jnp.tile(b1, (1, P))            # (1, P*hid)
    b2p = jnp.tile(b2, (1, P))
    b3p = jnp.tile(b3, (1, P))            # (1, P*out)

    # --- tile selection: large tiles, multiple of 8, keep >=2 grid steps when
    #     possible so both v7x TensorCores get work ---
    tm = max(8, (tm // 8) * 8)
    bp_min = _ceil_to(bp, 8)
    if bp_min >= 16:
        tile = min(tm, _ceil_to((bp_min + 1) // 2, 8))
    else:
        tile = bp_min
    pad_p = (-bp) % tile
    if pad_p:
        xp = jnp.pad(xp, ((0, pad_p), (0, 0)))
    bpt = xp.shape[0]
    grid = (bpt // tile,)

    pb, phid, pout = P * b, P * hid, P * out_dim
    full = lambda i: (0, 0)  # weights/biases: whole array, resident every step

    out = pl.pallas_call(
        decoder_kernel,
        out_shape=jax.ShapeDtypeStruct((bpt, pout), xp.dtype),
        grid_spec=pltpu.PrefetchScalarGridSpec(
            num_scalar_prefetch=0,
            grid=grid,
            in_specs=[
                pl.BlockSpec((tile, pb), lambda i: (i, 0)),   # packed x tile
                pl.BlockSpec((pb, phid), full),               # W1 (block-diag)
                pl.BlockSpec((1, phid), full),                # b1
                pl.BlockSpec((phid, phid), full),             # W2 (block-diag)
                pl.BlockSpec((1, phid), full),                # b2
                pl.BlockSpec((phid, pout), full),             # W3 (block-diag)
                pl.BlockSpec((1, pout), full),                # b3
            ],
            out_specs=pl.BlockSpec((tile, pout), lambda i: (i, 0)),
        ),
        compiler_params=pltpu.CompilerParams(
            dimension_semantics=("parallel",),
        ),
    )(xp, w1p, b1p, w2p, b2p, w3p, b3p)

    # unpack: (bpt, P*out_dim) row-major == (bpt*P, out_dim); drop padding rows
    out = out.reshape(bpt * P, out_dim)[:batch]
    return out.reshape(-1, 1, m, n)


def init_params(key, m, n, b, alpha=1):
    """Xavier-normal weights (stored transposed: (in, out)), zero biases."""
    hid = 16 * alpha

    def xavier(key, fan_in, fan_out):
        std = jnp.sqrt(2.0 / (fan_in + fan_out))
        # Sampled as (in, out); equivalent in distribution to the transposed
        # xavier_normal_ of the PyTorch (out, in) weight.
        return std * jax.random.normal(key, (fan_in, fan_out), dtype=jnp.float32)

    k1, k2, k3 = jax.random.split(key, 3)
    w1 = xavier(k1, b, hid)
    b1 = jnp.zeros((1, hid), jnp.float32)
    w2 = xavier(k2, hid, hid)
    b2 = jnp.zeros((1, hid), jnp.float32)
    w3 = xavier(k3, hid, m * n)
    b3 = jnp.zeros((1, m * n), jnp.float32)
    return (w1, b1, w2, b2, w3, b3)


def reference_forward(x, params, m, n, b):
    w1, b1, w2, b2, w3, b3 = params
    h = x.reshape(-1, b)
    h = jnp.tanh(h @ w1 + b1)
    h = jnp.tanh(h @ w2 + b2)
    h = jnp.tanh(h @ w3 + b3)
    return h.reshape(-1, 1, m, n)


if __name__ == "__main__":
    # decoderNet(m, n, b): small shapes.
    M, N, B_LATENT, ALPHA = 4, 4, 32, 1
    BATCH = 16

    key = jax.random.PRNGKey(0)
    kp, kx = jax.random.split(key)
    params = init_params(kp, M, N, B_LATENT, ALPHA)

    # Input latent code; PyTorch forward views it as (-1, 1, b).
    # Carried in bf16 end-to-end (HBM-bandwidth-bound path); compute is f32.
    x = jax.random.normal(kx, (BATCH, 1, B_LATENT), dtype=jnp.float32)
    x_bf16 = x.astype(jnp.bfloat16)

    y = decoder_forward(x_bf16, params, m=M, n=N, b=B_LATENT)
    y = jax.block_until_ready(y)

    # Reference in f32 with the same bf16-quantized input; output of the
    # kernel is bf16, so compare with a loose tolerance (|tanh| <= 1).
    y_ref = reference_forward(x_bf16.astype(jnp.float32), params, M, N, B_LATENT)
    assert y.shape == (BATCH, 1, M, N), y.shape
    assert jnp.allclose(y.astype(jnp.float32), y_ref, atol=1e-2, rtol=0.0), float(
        jnp.max(jnp.abs(y.astype(jnp.float32) - y_ref))
    )

    print("KERNEL_OK")
</pallas_src>

<mosaic_0001>
module attributes {stable_mosaic.version = 11 : i64} {
  func.func @decoder_kernel(%arg0: i32, %arg1: memref<8x256xbf16, #tpu.memory_space<vmem>>, %arg2: memref<256x128xf32, #tpu.memory_space<vmem>>, %arg3: memref<1x128xf32, #tpu.memory_space<vmem>>, %arg4: memref<128x128xf32, #tpu.memory_space<vmem>>, %arg5: memref<1x128xf32, #tpu.memory_space<vmem>>, %arg6: memref<128x128xf32, #tpu.memory_space<vmem>>, %arg7: memref<1x128xf32, #tpu.memory_space<vmem>>, %arg8: memref<8x128xbf16, #tpu.memory_space<vmem>>) attributes {dimension_semantics = [#tpu.dimension_semantics<parallel>], iteration_bounds = array<i64: 1>, scalar_prefetch = 0 : i64, scratch_operands = 0 : i64, tpu.core_type = #tpu.core_type<tc>, window_params = [{transform_indices = @transform_0, window_bounds = array<i64: 8, 256>}, {pipeline_mode = #tpu.pipeline_mode<synchronous>, transform_indices = @transform_1, window_bounds = array<i64: 256, 128>}, {pipeline_mode = #tpu.pipeline_mode<synchronous>, transform_indices = @transform_2, window_bounds = array<i64: 1, 128>}, {pipeline_mode = #tpu.pipeline_mode<synchronous>, transform_indices = @transform_3, window_bounds = array<i64: 128, 128>}, {pipeline_mode = #tpu.pipeline_mode<synchronous>, transform_indices = @transform_4, window_bounds = array<i64: 1, 128>}, {pipeline_mode = #tpu.pipeline_mode<synchronous>, transform_indices = @transform_5, window_bounds = array<i64: 128, 128>}, {pipeline_mode = #tpu.pipeline_mode<synchronous>, transform_indices = @transform_6, window_bounds = array<i64: 1, 128>}, {transform_indices = @transform_7, window_bounds = array<i64: 8, 128>}]} {
    %c0 = arith.constant 0 : index
    %c0_0 = arith.constant 0 : index
    %0 = vector.load %arg1[%c0, %c0_0] : memref<8x256xbf16, #tpu.memory_space<vmem>>, vector<8x256xbf16>
    %1 = arith.extf %0 : vector<8x256xbf16> to vector<8x256xf32>
    %c0_1 = arith.constant 0 : index
    %c0_2 = arith.constant 0 : index
    %2 = vector.load %arg2[%c0_1, %c0_2] : memref<256x128xf32, #tpu.memory_space<vmem>>, vector<256x128xf32>
    %cst = arith.constant dense<0.000000e+00> : vector<8x128xf32>
    %3 = tpu.matmul %1, %2, %cst {dimension_numbers = #tpu.dot_dimension_numbers<[1], [0], [0], [1], [0, 0, 1, 1], [], []>} : vector<8x256xf32>, vector<256x128xf32>, vector<8x128xf32> -> vector<8x128xf32>
    %c0_3 = arith.constant 0 : index
    %c0_4 = arith.constant 0 : index
    %4 = vector.load %arg3[%c0_3, %c0_4] : memref<1x128xf32, #tpu.memory_space<vmem>>, vector<1x128xf32>
    %5 = vector.broadcast %4 : vector<1x128xf32> to vector<8x128xf32>
    %6 = arith.addf %3, %5 : vector<8x128xf32>
    %7 = math.tanh %6 : vector<8x128xf32>
    %c0_5 = arith.constant 0 : index
    %c0_6 = arith.constant 0 : index
    %8 = vector.load %arg4[%c0_5, %c0_6] : memref<128x128xf32, #tpu.memory_space<vmem>>, vector<128x128xf32>
    %cst_7 = arith.constant dense<0.000000e+00> : vector<8x128xf32>
    %9 = tpu.matmul %7, %8, %cst_7 {dimension_numbers = #tpu.dot_dimension_numbers<[1], [0], [0], [1], [0, 0, 1, 1], [], []>} : vector<8x128xf32>, vector<128x128xf32>, vector<8x128xf32> -> vector<8x128xf32>
    %c0_8 = arith.constant 0 : index
    %c0_9 = arith.constant 0 : index
    %10 = vector.load %arg5[%c0_8, %c0_9] : memref<1x128xf32, #tpu.memory_space<vmem>>, vector<1x128xf32>
    %11 = vector.broadcast %10 : vector<1x128xf32> to vector<8x128xf32>
    %12 = arith.addf %9, %11 : vector<8x128xf32>
    %13 = math.tanh %12 : vector<8x128xf32>
    %c0_10 = arith.constant 0 : index
    %c0_11 = arith.constant 0 : index
    %14 = vector.load %arg6[%c0_10, %c0_11] : memref<128x128xf32, #tpu.memory_space<vmem>>, vector<128x128xf32>
    %cst_12 = arith.constant dense<0.000000e+00> : vector<8x128xf32>
    %15 = tpu.matmul %13, %14, %cst_12 {dimension_numbers = #tpu.dot_dimension_numbers<[1], [0], [0], [1], [0, 0, 1, 1], [], []>} : vector<8x128xf32>, vector<128x128xf32>, vector<8x128xf32> -> vector<8x128xf32>
    %c0_13 = arith.constant 0 : index
    %c0_14 = arith.constant 0 : index
    %16 = vector.load %arg7[%c0_13, %c0_14] : memref<1x128xf32, #tpu.memory_space<vmem>>, vector<1x128xf32>
    %17 = vector.broadcast %16 : vector<1x128xf32> to vector<8x128xf32>
    %18 = arith.addf %15, %17 : vector<8x128xf32>
    %19 = math.tanh %18 : vector<8x128xf32>
    %20 = arith.truncf %19 : vector<8x128xf32> to vector<8x128xbf16>
    %c0_15 = arith.constant 0 : index
    %c0_16 = arith.constant 0 : index
    %21 = vector.load %arg8[%c0_15, %c0_16] : memref<8x128xbf16, #tpu.memory_space<vmem>>, vector<8x128xbf16>
    tpu.vector_store %arg8[%c0_15, %c0_16], %20 {strides = array<i32>} : memref<8x128xbf16, #tpu.memory_space<vmem>>, vector<8x128xbf16>,
    return
  }
  func.func @transform_0(%arg0: i32) -> (i32, i32) {
    %c0_i32 = arith.constant 0 : i32
    %c0_i32_0 = arith.constant 0 : i32
    return %arg0, %c0_i32 : i32, i32
  }
  func.func @transform_1(%arg0: i32) -> (i32, i32) {
    %c0_i32 = arith.constant 0 : i32
    %c0_i32_0 = arith.constant 0 : i32
    %c0_i32_1 = arith.constant 0 : i32
    return %c0_i32, %c0_i32_0 : i32, i32
  }
  func.func @transform_2(%arg0: i32) -> (i32, i32) {
    %c0_i32 = arith.constant 0 : i32
    %c0_i32_0 = arith.constant 0 : i32
    %c0_i32_1 = arith.constant 0 : i32
    return %c0_i32, %c0_i32_0 : i32, i32
  }
  func.func @transform_3(%arg0: i32) -> (i32, i32) {
    %c0_i32 = arith.constant 0 : i32
    %c0_i32_0 = arith.constant 0 : i32
    %c0_i32_1 = arith.constant 0 : i32
    return %c0_i32, %c0_i32_0 : i32, i32
  }
  func.func @transform_4(%arg0: i32) -> (i32, i32) {
    %c0_i32 = arith.constant 0 : i32
    %c0_i32_0 = arith.constant 0 : i32
    %c0_i32_1 = arith.constant 0 : i32
    return %c0_i32, %c0_i32_0 : i32, i32
  }
  func.func @transform_5(%arg0: i32) -> (i32, i32) {
    %c0_i32 = arith.constant 0 : i32
    %c0_i32_0 = arith.constant 0 : i32
    %c0_i32_1 = arith.constant 0 : i32
    return %c0_i32, %c0_i32_0 : i32, i32
  }
  func.func @transform_6(%arg0: i32) -> (i32, i32) {
    %c0_i32 = arith.constant 0 : i32
    %c0_i32_0 = arith.constant 0 : i32
    %c0_i32_1 = arith.constant 0 : i32
    return %c0_i32, %c0_i32_0 : i32, i32
  }
  func.func @transform_7(%arg0: i32) -> (i32, i32) {
    %c0_i32 = arith.constant 0 : i32
    %c0_i32_0 = arith.constant 0 : i32
    return %arg0, %c0_i32 : i32, i32
  }
}

</mosaic_0001>

<llo_original>
// kernel: decoder_forward.1
$region0: #{decoder_forward.1}
  #allocation0 [shape = 'u32[]', space=smem, size = 0x4, offset = 0x4, fixed_abs, tag = 'smem constant byte address 0x4 - core index']
  #allocation1 [shape = 'u32[72,128]{1,0:T(1,128)}', space=vmem, size = 0x9000, scoped, tag = 'internal scratch']
  %s0 = inlined_call_operand.vmem [shape: bf16[8,256], index: 0, kind: input, shape index: {}]
  %s1 = inlined_call_operand.vmem [shape: f32[256,128], index: 1, kind: input, shape index: {}]
  %s2 = inlined_call_operand.vmem [shape: f32[1,128], index: 2, kind: input, shape index: {}]
  %s3 = inlined_call_operand.vmem [shape: f32[128,128], index: 3, kind: input, shape index: {}]
  %s4 = inlined_call_operand.vmem [shape: f32[1,128], index: 4, kind: input, shape index: {}]
  %s5 = inlined_call_operand.vmem [shape: f32[128,128], index: 5, kind: input, shape index: {}]
  %s6 = inlined_call_operand.vmem [shape: f32[1,128], index: 6, kind: input, shape index: {}]
  %s7 = inlined_call_operand.vmem [shape: bf16[8,128], index: 7, kind: output, shape index: {}]
  %s8 = sld [smem:[#allocation0]]
  $region38: #{decoder_forward.1} parent=0
    _
  %s10 = ssub.s32 1, %s8
  %s11 = scalar_select 0, %s10, %s8
  // Predicated region
  $region2: #{decoder_forward.1} parent=0 // pred_check
    _
  $region3: #{decoder_forward.1} parent=0 // pred_check_branch
    %13 = sbr.rel (0) target = $region5
  $region4: #{decoder_forward.1} parent=0 // pred_region
    _
  $region5: #{decoder_forward.1} parent=0 // pred_fallthru
    _
  // Predicated region
  $region6: #{decoder_forward.1} parent=0 // pred_check
    _
  $region7: #{decoder_forward.1} parent=0 // pred_check_branch
    %15 = sbr.rel (0) target = $region9
  $region8: #{decoder_forward.1} parent=0 // pred_region
    _
  $region9: #{decoder_forward.1} parent=0 // pred_fallthru
    _
  // Predicated region
  $region10: #{decoder_forward.1} parent=0 // pred_check
    _
  $region11: #{decoder_forward.1} parent=0 // pred_check_branch
    %17 = sbr.rel (0) target = $region13
  $region12: #{decoder_forward.1} parent=0 // pred_region
    _
  $region13: #{decoder_forward.1} parent=0 // pred_fallthru
    _
  // Predicated region
  $region14: #{decoder_forward.1} parent=0 // pred_check
    _
  $region15: #{decoder_forward.1} parent=0 // pred_check_branch
    %19 = sbr.rel (0) target = $region17
  $region16: #{decoder_forward.1} parent=0 // pred_region
    _
  $region17: #{decoder_forward.1} parent=0 // pred_fallthru
    _
  // Predicated region
  $region18: #{decoder_forward.1} parent=0 // pred_check
    _
  $region19: #{decoder_forward.1} parent=0 // pred_check_branch
    %21 = sbr.rel (0) target = $region21
  $region20: #{decoder_forward.1} parent=0 // pred_region
    _
  $region21: #{decoder_forward.1} parent=0 // pred_fallthru
    _
  // Predicated region
  $region22: #{decoder_forward.1} parent=0 // pred_check
    _
  $region23: #{decoder_forward.1} parent=0 // pred_check_branch
    %23 = sbr.rel (0) target = $region25
  $region24: #{decoder_forward.1} parent=0 // pred_region
    _
  $region25: #{decoder_forward.1} parent=0 // pred_fallthru
    _
  // Predicated region
  $region26: #{decoder_forward.1} parent=0 // pred_check
    _
  $region27: #{decoder_forward.1} parent=0 // pred_check_branch
    %25 = sbr.rel (0) target = $region29
  $region28: #{decoder_forward.1} parent=0 // pred_region
    _
  $region29: #{decoder_forward.1} parent=0 // pred_fallthru
    _
  %v26 = vld [vmem:[%s0] sm:$0xff]
  %v27 = vunpack.c.l.bf16 %v26
  %v28 = vunpack.c.h.bf16 %v26
  %v29 = vld [vmem:[%s1] sm:$0xff]
  %v30 = vld [vmem:[%s1 + $0x8] sm:$0xff]
  %v31 = vld [vmem:[%s1 + $0x10] sm:$0xff]
  %v32 = vld [vmem:[%s1 + $0x18] sm:$0xff]
  %v33 = vld [vmem:[%s1 + $0x20] sm:$0xff]
  %v34 = vld [vmem:[%s1 + $0x28] sm:$0xff]
  %v35 = vld [vmem:[%s1 + $0x30] sm:$0xff]
  %v36 = vld [vmem:[%s1 + $0x38] sm:$0xff]
  %v37 = vld [vmem:[%s1 + $0x40] sm:$0xff]
  %v38 = vld [vmem:[%s1 + $0x48] sm:$0xff]
  %v39 = vld [vmem:[%s1 + $0x50] sm:$0xff]
  %v40 = vld [vmem:[%s1 + $0x58] sm:$0xff]
  %v41 = vld [vmem:[%s1 + $0x60] sm:$0xff]
  %v42 = vld [vmem:[%s1 + $0x68] sm:$0xff]
  %v43 = vld [vmem:[%s1 + $0x70] sm:$0xff]
  %v44 = vld [vmem:[%s1 + $0x78] sm:$0xff]
  %v45 = vld [vmem:[%s1 + $0x80] sm:$0xff]
  %v46 = vld [vmem:[%s1 + $0x88] sm:$0xff]
  %v47 = vld [vmem:[%s1 + $0x90] sm:$0xff]
  %v48 = vld [vmem:[%s1 + $0x98] sm:$0xff]
  %v49 = vld [vmem:[%s1 + $0xa0] sm:$0xff]
  %v50 = vld [vmem:[%s1 + $0xa8] sm:$0xff]
  %v51 = vld [vmem:[%s1 + $0xb0] sm:$0xff]
  %v52 = vld [vmem:[%s1 + $0xb8] sm:$0xff]
  %v53 = vld [vmem:[%s1 + $0xc0] sm:$0xff]
  %v54 = vld [vmem:[%s1 + $0xc8] sm:$0xff]
  %v55 = vld [vmem:[%s1 + $0xd0] sm:$0xff]
  %v56 = vld [vmem:[%s1 + $0xd8] sm:$0xff]
  %v57 = vld [vmem:[%s1 + $0xe0] sm:$0xff]
  %v58 = vld [vmem:[%s1 + $0xe8] sm:$0xff]
  %v59 = vld [vmem:[%s1 + $0xf0] sm:$0xff]
  %v60 = vld [vmem:[%s1 + $0xf8] sm:$0xff]
  %v61 = vld [vmem:[%s2] sm:$0x1]
  %v63 = vperm.slane %v61, 0
  %65 = vmatpush.msra.mxu0 %v44
  %66 = vmatpush.msra.mxu0 %v43
  %67 = vmatpush.msra.mxu0 %v42
  %68 = vmatpush.msra.mxu0 %v41
  %69 = vmatpush.msra.mxu0 %v40
  %70 = vmatpush.msra.mxu0 %v39
  %71 = vmatpush.msra.mxu0 %v38
  %72 = vmatpush.msra.mxu0 %v37
  %73 = vmatpush.msra.mxu0 %v36
  %74 = vmatpush.msra.mxu0 %v35
  %75 = vmatpush.msra.mxu0 %v34
  %76 = vmatpush.msra.mxu0 %v33
  %77 = vmatpush.msra.mxu0 %v32
  %78 = vmatpush.msra.mxu0 %v31
  %79 = vmatpush.msra.mxu0 %v30
  %80 = vmatpush.msra.mxu0 %v29
  %81 = vmatmul.f32.gmra.mxu0 %v27
  %v82 = vpop.f32.mrf.mxu0
  %v83 = vadd.f32 %v63, %v82
  %84 = vdwg.mxu0
  %85 = vmatpush.msra.mxu0 %v60
  %86 = vmatpush.msra.mxu0 %v59
  %87 = vmatpush.msra.mxu0 %v58
  %88 = vmatpush.msra.mxu0 %v57
  %89 = vmatpush.msra.mxu0 %v56
  %90 = vmatpush.msra.mxu0 %v55
  %91 = vmatpush.msra.mxu0 %v54
  %92 = vmatpush.msra.mxu0 %v53
  %93 = vmatpush.msra.mxu0 %v52
  %94 = vmatpush.msra.mxu0 %v51
  %95 = vmatpush.msra.mxu0 %v50
  %96 = vmatpush.msra.mxu0 %v49
  %97 = vmatpush.msra.mxu0 %v48
  %98 = vmatpush.msra.mxu0 %v47
  %99 = vmatpush.msra.mxu0 %v46
  %100 = vmatpush.msra.mxu0 %v45
  %101 = vmatmul.f32.gmra.mxu0 %v28
  %v102 = vpop.f32.mrf.mxu0
  %v103 = vadd.f32 %v83, %v102
  %104 = vdwg.mxu0
  %v105 = vtanh.pop %v103
  %v106 = vld [vmem:[%s3] sm:$0xff]
  %v107 = vld [vmem:[%s3 + $0x8] sm:$0xff]
  %v108 = vld [vmem:[%s3 + $0x10] sm:$0xff]
  %v109 = vld [vmem:[%s3 + $0x18] sm:$0xff]
  %v110 = vld [vmem:[%s3 + $0x20] sm:$0xff]
  %v111 = vld [vmem:[%s3 + $0x28] sm:$0xff]
  %v112 = vld [vmem:[%s3 + $0x30] sm:$0xff]
  %v113 = vld [vmem:[%s3 + $0x38] sm:$0xff]
  %v114 = vld [vmem:[%s3 + $0x40] sm:$0xff]
  %v115 = vld [vmem:[%s3 + $0x48] sm:$0xff]
  %v116 = vld [vmem:[%s3 + $0x50] sm:$0xff]
  %v117 = vld [vmem:[%s3 + $0x58] sm:$0xff]
  %v118 = vld [vmem:[%s3 + $0x60] sm:$0xff]
  %v119 = vld [vmem:[%s3 + $0x68] sm:$0xff]
  %v120 = vld [vmem:[%s3 + $0x70] sm:$0xff]
  %v121 = vld [vmem:[%s3 + $0x78] sm:$0xff]
  %v122 = vld [vmem:[%s4] sm:$0x1]
  %v124 = vperm.slane %v122, 0
  %126 = vmatpush.msra.mxu0 %v121
  %127 = vmatpush.msra.mxu0 %v120
  %128 = vmatpush.msra.mxu0 %v119
  %129 = vmatpush.msra.mxu0 %v118
  %130 = vmatpush.msra.mxu0 %v117
  %131 = vmatpush.msra.mxu0 %v116
  %132 = vmatpush.msra.mxu0 %v115
  %133 = vmatpush.msra.mxu0 %v114
  %134 = vmatpush.msra.mxu0 %v113
  %135 = vmatpush.msra.mxu0 %v112
  %136 = vmatpush.msra.mxu0 %v111
  %137 = vmatpush.msra.mxu0 %v110
  %138 = vmatpush.msra.mxu0 %v109
  %139 = vmatpush.msra.mxu0 %v108
  %140 = vmatpush.msra.mxu0 %v107
  %141 = vmatpush.msra.mxu0 %v106
  %142 = vmatmul.f32.gmra.mxu0 %v105
  %v143 = vpop.f32.mrf.mxu0
  %v144 = vadd.f32 %v124, %v143
  %145 = vdwg.mxu0
  %v146 = vtanh.pop %v144
  %v147 = vld [vmem:[%s5] sm:$0xff]
  %v148 = vld [vmem:[%s5 + $0x8] sm:$0xff]
  %v149 = vld [vmem:[%s5 + $0x10] sm:$0xff]
  %v150 = vld [vmem:[%s5 + $0x18] sm:$0xff]
  %v151 = vld [vmem:[%s5 + $0x20] sm:$0xff]
  %v152 = vld [vmem:[%s5 + $0x28] sm:$0xff]
  %v153 = vld [vmem:[%s5 + $0x30] sm:$0xff]
  %v154 = vld [vmem:[%s5 + $0x38] sm:$0xff]
  %v155 = vld [vmem:[%s5 + $0x40] sm:$0xff]
  %v156 = vld [vmem:[%s5 + $0x48] sm:$0xff]
  %v157 = vld [vmem:[%s5 + $0x50] sm:$0xff]
  %v158 = vld [vmem:[%s5 + $0x58] sm:$0xff]
  %v159 = vld [vmem:[%s5 + $0x60] sm:$0xff]
  %v160 = vld [vmem:[%s5 + $0x68] sm:$0xff]
  %v161 = vld [vmem:[%s5 + $0x70] sm:$0xff]
  %v162 = vld [vmem:[%s5 + $0x78] sm:$0xff]
  %v163 = vld [vmem:[%s6] sm:$0x1]
  %v165 = vperm.slane %v163, 0
  %167 = vmatpush.msra.mxu0 %v162
  %168 = vmatpush.msra.mxu0 %v161
  %169 = vmatpush.msra.mxu0 %v160
  %170 = vmatpush.msra.mxu0 %v159
  %171 = vmatpush.msra.mxu0 %v158
  %172 = vmatpush.msra.mxu0 %v157
  %173 = vmatpush.msra.mxu0 %v156
  %174 = vmatpush.msra.mxu0 %v155
  %175 = vmatpush.msra.mxu0 %v154
  %176 = vmatpush.msra.mxu0 %v153
  %177 = vmatpush.msra.mxu0 %v152
  %178 = vmatpush.msra.mxu0 %v151
  %179 = vmatpush.msra.mxu0 %v150
  %180 = vmatpush.msra.mxu0 %v149
  %181 = vmatpush.msra.mxu0 %v148
  %182 = vmatpush.msra.mxu0 %v147
  %183 = vmatmul.f32.gmra.mxu0 %v146
  %v184 = vpop.f32.mrf.mxu0
  %v185 = vadd.f32 %v165, %v184
  %186 = vdwg.mxu0
  %v187 = vtanh.pop %v185
  %v188 = vpack.c.bf16 %v187, %v187
  %189 = vst [vmem:[%s7] sm:$0xf] %v188
  // Predicated region
  $region30: #{decoder_forward.1} parent=0 // pred_check
    _
  $region31: #{decoder_forward.1} parent=0 // pred_check_branch
    %191 = sbr.rel (0) target = $region33
  $region32: #{decoder_forward.1} parent=0 // pred_region
    _
  $region33: #{decoder_forward.1} parent=0 // pred_fallthru
    _
  // Predicated region
  $region34: #{decoder_forward.1} parent=0 // pred_check
    _
  $region35: #{decoder_forward.1} parent=0 // pred_check_branch
    %193 = sbr.rel (0) target = $region37
  $region36: #{decoder_forward.1} parent=0 // pred_region
    _
  $region37: #{decoder_forward.1} parent=0 // pred_fallthru
    _

</llo_original>
